<compile_context>
chip_gen: v6e
topology: v6e:2x2x1
jax: 0.10.0
libtpu: 0.0.40
codegen_flags: <defaults>
</compile_context>

<pallas_src>
import functools

import jax
import jax.numpy as jnp
from jax import lax
from jax.experimental import pallas as pl
from jax.experimental.pallas import tpu as pltpu


# ----------------------------------------------------------------------------
# per-generation VMEM budgets
# ----------------------------------------------------------------------------
def _round_up(x, m):
    return (x + m - 1) // m * m


@functools.lru_cache(maxsize=1)
def _vmem_budgets():
    """(tile_budget_bytes, vmem_limit_bytes) tuned per TPU generation."""
    vmem_cap = None
    try:
        info = pltpu.get_tpu_info()
        vmem_cap = getattr(info, "vmem_capacity_bytes", None)
    except Exception:
        vmem_cap = None
    if vmem_cap is not None and vmem_cap >= 100 * 1024 * 1024:
        # v5e / v6e: 128 MiB physical VMEM -> large tiles, high scoped limit.
        return 40 * 1024 * 1024, 96 * 1024 * 1024
    # v7x (64 MiB shared by 2 TCs) or unknown chip: stay conservative.
    return 12 * 1024 * 1024, 40 * 1024 * 1024


def _cparams():
    _, limit = _vmem_budgets()
    return pltpu.CompilerParams(dimension_semantics=("parallel",),
                                vmem_limit_bytes=limit)


def _matmul_tile_rows(M, K, Cout, n_fused):
    """Largest M-tile (multiple of 8) whose working set fits the budget."""
    budget, _ = _vmem_budgets()
    per_row = 2 * 2 * K + 2 * 4 * Cout + n_fused * 2 * 4 * Cout   # bf16 x, f32 out (dbl-buf)
    fixed = 2 * 2 * K * Cout + 2 * 4 * Cout + (1 << 16)
    avail = max(budget - fixed, 8 * per_row)
    tm = max(8, min(8192, avail // per_row))
    tm -= tm % 8
    m8 = _round_up(M, 8)
    if tm >= m8:
        tm = m8
        if M >= 64:                      # keep >= 2 blocks so both v7x TCs work
            tm = _round_up((M + 1) // 2, 8)
    return tm


def _conv3x3_tile_rows(N, Hout, Wout, Cin, Cout):
    budget, _ = _vmem_budgets()
    Wp = Wout + 2
    per_row = 2 * Wp * Cin + 4 * Wp * Cout + 2 * 4 * Wout * Cout
    fixed = 2 * (2 * Wp + 2) * Cin + 2 * 2 * 9 * Cin * Cout + (1 << 16)
    avail = max(budget - fixed, per_row)
    tr = max(1, min(64, avail // per_row))      # <=64 keeps the store loop small
    if tr >= Hout:
        tr = Hout
        if N == 1 and Hout >= 8:                # >=2 grid blocks for 2-TC chips
            tr = (Hout + 1) // 2
    return tr


# ----------------------------------------------------------------------------
# Pallas kernels
# ----------------------------------------------------------------------------
def _matmul_bias_kernel(x_ref, w_ref, b_ref, o_ref):
    """One conv tile: out = x_tile @ W + b (taps folded into K).  bf16 -> f32."""
    o_ref[...] = (jnp.dot(x_ref[...], w_ref[...],
                          preferred_element_type=jnp.float32)
                  + b_ref[...]).astype(o_ref.dtype)


def _matmul_bias_wsum3_kernel(fw_ref, x_ref, w_ref, b_ref, a_ref, c_ref, o_ref):
    """Fused stride-2 d_conv + BiFPN 3-way weighted fusion:
       out = fw0 * a + fw1 * c + fw2 * (x_tile @ W + b).  fw lives in SMEM."""
    d = jnp.dot(x_ref[...], w_ref[...],
                preferred_element_type=jnp.float32) + b_ref[...]
    o_ref[...] = (fw_ref[0] * a_ref[...] + fw_ref[1] * c_ref[...]
                  + fw_ref[2] * d).astype(o_ref.dtype)


def _td_fuse_kernel(fw_ref, c_ref, f_ref, o_ref):
    """Top-down fusion with the 2x nearest row-upsample fused in:
       out[:, p] = fw0 * coarse + fw1 * fine[:, p]  for p in {0, 1}."""
    up = c_ref[...]                                   # (tr, Wf, C)
    o_ref[...] = (fw_ref[0] * up[:, None, :, :]
                  + fw_ref[1] * f_ref[...]).astype(o_ref.dtype)


def _wsum2_kernel(fw_ref, x_ref, y_ref, o_ref):
    """Generic 2-way weighted fusion on a 2-D row slab (fallback path)."""
    o_ref[...] = (fw_ref[0] * x_ref[...]
                  + fw_ref[1] * y_ref[...]).astype(o_ref.dtype)


# ----------------------------------------------------------------------------
# 3x3 / stride-1 conv with in-kernel halo im2col (no 9x slab in HBM)
# ----------------------------------------------------------------------------
def _conv3x3_s1_pallas(x, w, b):
    N, H, W, Cin = x.shape
    Cout = w.shape[-1]
    Hout, Wout = H, W
    Wp = Wout + 2

    TR = _conv3x3_tile_rows(N, Hout, Wout, Cin, Cout)
    R = -(-Hout // TR)                 # row tiles per image
    Hout_p = R * TR
    Limg = (Hout_p + 3) * Wp           # rows per image in the flat padded slab
    XB = (TR + 2) * Wp + 2             # halo rows DMA'd per tile
    TRWp = TR * Wp

    # Spatial pad (1 px conv halo + row round-up + 1 slack row), cast bf16,
    # flatten (H, W) so every 3x3 tap becomes a contiguous 2-D row slice.
    xb = x.astype(jnp.bfloat16)
    xp = jnp.pad(xb, ((0, 0), (1, Hout_p - Hout + 2), (1, 1), (0, 0)))
    xp_flat = xp.reshape(N * Limg, Cin)

    wb = w.astype(jnp.bfloat16).reshape(9, Cin, Cout)
    b2 = b.astype(jnp.float32).reshape(1, Cout)

    def kernel(xp_ref, w_ref, b_ref, o_ref, xbuf, acc_ref, sem):
        i = pl.program_id(0)
        n = i // R
        r = i - n * R
        src = n * Limg + r * TRWp
        cp = pltpu.make_async_copy(xp_ref.at[pl.ds(src, XB)], xbuf, sem.at[0])
        cp.start()
        cp.wait()
        # TODO(synk): double-buffer this DMA across grid steps to hide latency.
        first = True
        for kh in range(3):
            for kw in range(3):
                off = kh * Wp + kw
                xt = xbuf[off:off + TRWp, :]                 # (TR*Wp, Cin) bf16
                p = jnp.dot(xt, w_ref[kh * 3 + kw],
                            preferred_element_type=jnp.float32)
                if first:
                    acc_ref[...] = p
                    first = False
                else:
                    acc_ref[...] += p
        # Each group of Wp accumulator rows = Wout valid outputs + 2 junk
        # (horizontal pad) rows; store only the valid ones, add bias late.
        for t in range(TR):
            o_ref[t] = (acc_ref[t * Wp:t * Wp + Wout, :]
                        + b_ref[...]).astype(o_ref.dtype)

    out = pl.pallas_call(
        kernel,
        out_shape=jax.ShapeDtypeStruct((N * Hout_p, Wout, Cout), jnp.float32),
        grid_spec=pltpu.PrefetchScalarGridSpec(
            num_scalar_prefetch=0,
            grid=(N * R,),
            in_specs=[pl.BlockSpec(memory_space=pl.ANY),
                      pl.BlockSpec((9, Cin, Cout), lambda i: (0, 0, 0)),
                      pl.BlockSpec((1, Cout), lambda i: (0, 0))],
            out_specs=pl.BlockSpec((TR, Wout, Cout), lambda i: (i, 0, 0)),
            scratch_shapes=[pltpu.VMEM((XB, Cin), jnp.bfloat16),
                            pltpu.VMEM((TRWp, Cout), jnp.float32),
                            pltpu.SemaphoreType.DMA((1,))]),
        compiler_params=_cparams(),
        cost_estimate=pl.CostEstimate(
            flops=2 * 9 * N * Hout_p * Wp * Cin * Cout,
            transcendentals=0,
            bytes_accessed=(N * Limg * Cin * 2 + 9 * Cin * Cout * 2
                            + N * Hout_p * Wout * Cout * 4)),
    )(xp_flat, wb, b2)

    out = out.reshape(N, Hout_p, Wout, Cout)
    if Hout_p != Hout:
        out = out[:, :Hout]
    return out


# ----------------------------------------------------------------------------
# matmul-style conv (1x1 laterals; stride-2 d_conv keeps XLA im2col for now)
# ----------------------------------------------------------------------------
def _im2col(x, k, stride):
    N, H, W, Cin = x.shape
    pad = (k - 1) // 2
    Hout = (H + 2 * pad - k) // stride + 1
    Wout = (W + 2 * pad - k) // stride + 1
    if k == 1 and stride == 1:
        return x.reshape(N * H * W, Cin), Hout, Wout
    xp = jnp.pad(x, ((0, 0), (pad, pad), (pad, pad), (0, 0)))
    cols = []
    for kh in range(k):
        for kw in range(k):
            cols.append(xp[:, kh:kh + (Hout - 1) * stride + 1:stride,
                              kw:kw + (Wout - 1) * stride + 1:stride, :])
    xc = jnp.concatenate(cols, axis=-1)
    return xc.reshape(N * Hout * Wout, k * k * Cin), Hout, Wout


def _conv_matmul_pallas(x, w, b, stride=1, fuse=None):
    N, H, W, Cin = x.shape
    k = w.shape[0]
    Cout = w.shape[-1]

    x_cols, Hout, Wout = _im2col(x.astype(jnp.bfloat16), k, stride)
    K = x_cols.shape[-1]
    M = N * Hout * Wout

    w2 = w.astype(jnp.bfloat16).reshape(K, Cout)
    b2 = b.astype(jnp.float32).reshape(1, Cout)

    n_fused = 0 if fuse is None else 2
    tm = _matmul_tile_rows(M, K, Cout, n_fused)
    grid = (pl.cdiv(M, tm),)

    x_spec = pl.BlockSpec((tm, K), lambda i: (i, 0))
    # TODO(synk): pipeline_mode=pl.Buffered(1) on these grid-invariant specs.
    w_spec = pl.BlockSpec((K, Cout), lambda i: (0, 0))
    b_spec = pl.BlockSpec((1, Cout), lambda i: (0, 0))
    o_spec = pl.BlockSpec((tm, Cout), lambda i: (i, 0))

    ce = pl.CostEstimate(flops=2 * M * K * Cout, transcendentals=0,
                         bytes_accessed=(M * K * 2 + K * Cout * 2
                                         + (1 + n_fused) * M * Cout * 4))

    if fuse is None:
        out = pl.pallas_call(
            _matmul_bias_kernel,
            out_shape=jax.ShapeDtypeStruct((M, Cout), jnp.float32),
            grid_spec=pltpu.PrefetchScalarGridSpec(
                num_scalar_prefetch=0, grid=grid,
                in_specs=[x_spec, w_spec, b_spec],
                out_specs=o_spec),
            compiler_params=_cparams(),
            cost_estimate=ce,
        )(x_cols, w2, b2)
    else:
        fw, a, c = fuse
        af = a.reshape(M, Cout).astype(jnp.float32)
        cf = c.reshape(M, Cout).astype(jnp.float32)
        e_spec = pl.BlockSpec((tm, Cout), lambda i: (i, 0))
        out = pl.pallas_call(
            _matmul_bias_wsum3_kernel,
            out_shape=jax.ShapeDtypeStruct((M, Cout), jnp.float32),
            grid_spec=pltpu.PrefetchScalarGridSpec(
                num_scalar_prefetch=0, grid=grid,
                in_specs=[pl.BlockSpec(memory_space=pltpu.MemorySpace.SMEM),
                          x_spec, w_spec, b_spec, e_spec, e_spec],
                out_specs=o_spec),
            compiler_params=_cparams(),
            cost_estimate=ce,
        )(fw, x_cols, w2, b2, af, cf)

    return out.reshape(N, Hout, Wout, Cout)


def conv2d_pallas(x, w, b, stride=1, fuse=None):
    if w.shape[0] == 3 and stride == 1 and fuse is None:
        return _conv3x3_s1_pallas(x, w, b)
    return _conv_matmul_pallas(x, w, b, stride=stride, fuse=fuse)


# ----------------------------------------------------------------------------
# top-down fusion (nearest upsample + 2-way weighted sum)
# ----------------------------------------------------------------------------
def nearest_resize(x, out_hw):
    """F.interpolate(mode='nearest') equivalent (index-gather glue)."""
    N, H, W, C = x.shape
    Ho, Wo = out_hw
    ridx = (jnp.arange(Ho) * H) // Ho
    cidx = (jnp.arange(Wo) * W) // Wo
    return x[:, ridx][:, :, cidx]


def td_fuse_pallas(fw, coarse, fine):
    """out = fw0 * nearest_upsample(coarse) + fw1 * fine."""
    N, Hc, Wc, C = coarse.shape
    _, Hf, Wf, _ = fine.shape
    budget, _ = _vmem_budgets()

    if Hf == 2 * Hc and Wf == 2 * Wc:
        # Row duplication fused in-kernel (fine viewed as (N*Hc, 2, Wf, C));
        # column duplication done by XLA on the small coarse map.
        # TODO(synk): fuse the column duplication into the kernel as well.
        c2 = jnp.repeat(coarse, 2, axis=2).reshape(N * Hc, Wf, C)
        f2 = fine.reshape(N * Hc, 2, Wf, C)
        rows = N * Hc
        per_row = 4 * (2 * Wf * C + 2 * 2 * Wf * C + 2 * 2 * Wf * C)
        tr = max(1, min(rows, budget // per_row))
        out = pl.pallas_call(
            _td_fuse_kernel,
            out_shape=jax.ShapeDtypeStruct((rows, 2, Wf, C), jnp.float32),
            grid_spec=pltpu.PrefetchScalarGridSpec(
                num_scalar_prefetch=0, grid=(pl.cdiv(rows, tr),),
                in_specs=[pl.BlockSpec(memory_space=pltpu.MemorySpace.SMEM),
                          pl.BlockSpec((tr, Wf, C), lambda i: (i, 0, 0)),
                          pl.BlockSpec((tr, 2, Wf, C), lambda i: (i, 0, 0, 0))],
                out_specs=pl.BlockSpec((tr, 2, Wf, C), lambda i: (i, 0, 0, 0))),
            compiler_params=_cparams(),
        )(fw, c2, f2)
        return out.reshape(N, Hf, Wf, C)

    # Generic ratio fallback: XLA nearest resize + plain tiled weighted sum.
    up = nearest_resize(coarse, (Hf, Wf)).reshape(N * Hf, Wf * C)
    f2 = fine.reshape(N * Hf, Wf * C)
    rows, cols = f2.shape
    per_row = 4 * 3 * 2 * cols
    tr = min(rows, max(8, budget // per_row))
    if tr < rows:
        tr = max(8, tr - tr % 8)
    spec = pl.BlockSpec((tr, cols), lambda i: (i, 0))
    out = pl.pallas_call(
        _wsum2_kernel,
        out_shape=jax.ShapeDtypeStruct((rows, cols), jnp.float32),
        grid_spec=pltpu.PrefetchScalarGridSpec(
            num_scalar_prefetch=0, grid=(pl.cdiv(rows, tr),),
            in_specs=[pl.BlockSpec(memory_space=pltpu.MemorySpace.SMEM),
                      spec, spec],
            out_specs=spec),
        compiler_params=_cparams(),
    )(fw, up, f2)
    return out.reshape(N, Hf, Wf, C)


# ----------------------------------------------------------------------------
# Pure-JAX reference ops (bf16-quantized identically, for correctness check)
# ----------------------------------------------------------------------------
def conv2d_ref(x, w, b, stride=1, fuse=None):
    k = w.shape[0]
    pad = (k - 1) // 2
    y = lax.conv_general_dilated(
        x.astype(jnp.bfloat16), w.astype(jnp.bfloat16), (stride, stride),
        [(pad, pad), (pad, pad)],
        dimension_numbers=('NHWC', 'HWIO', 'NHWC'),
        preferred_element_type=jnp.float32) + b
    if fuse is not None:
        fw, a, c = fuse
        y = fw[0] * a + fw[1] * c + fw[2] * y
    return y


def td_fuse_ref(fw, coarse, fine):
    up = nearest_resize(coarse, fine.shape[1:3])
    return fw[0] * up + fw[1] * fine


# ----------------------------------------------------------------------------
# BiFPN forward
# ----------------------------------------------------------------------------
def bifpn_forward(inputs_nchw, params, use_pallas=True):
    conv = conv2d_pallas if use_pallas else conv2d_ref
    td_fuse = td_fuse_pallas if use_pallas else td_fuse_ref

    xs = [jnp.transpose(x, (0, 2, 3, 1)) for x in inputs_nchw]   # NCHW -> NHWC
    L = len(xs)

    # lateral 1x1 convs (single-matmul path, no pad / no taps)
    laterals = [conv(xs[i], params['lat_w'][i], params['lat_b'][i])
                for i in range(L)]

    # fusion-weight normalization (tiny length-2/3 vectors: plain JAX glue)
    td_ws, bu_ws = [], []
    for i in range(L - 1):
        tw = jax.nn.relu(params['td_fuse'][i]); tw = tw / (jnp.sum(tw) + 1e-4)
        bw = jax.nn.relu(params['bu_fuse'][i]); bw = bw / (jnp.sum(bw) + 1e-4)
        td_ws.append(tw); bu_ws.append(bw)

    # top-down pathway (mutates `laterals` -- matches PyTorch aliasing)
    for i in range(L - 1, 0, -1):
        laterals[i - 1] = td_fuse(td_ws[i - 1], laterals[i], laterals[i - 1])

    td_outputs = [conv(laterals[i], params['fpn_w'][i], params['fpn_b'][i])
                  for i in range(L)]

    # bottom-up pathway: 3-way weighted fusion fused into the d_conv epilogue
    bu_outputs = list(td_outputs)
    for i in range(1, L):
        bu_outputs[i] = conv(bu_outputs[i - 1],
                             params['d_w'][i - 1], params['d_b'][i - 1],
                             stride=2,
                             fuse=(bu_ws[i - 1], laterals[i], bu_outputs[i]))
    for i in range(1, L):
        bu_outputs[i] = conv(bu_outputs[i],
                             params['buc_w'][i - 1], params['buc_b'][i - 1])

    # F.max_pool2d(kernel=1, stride=2) == strided subsampling (glue)
    bu_outputs.append(bu_outputs[-1][:, ::2, ::2, :])

    return tuple(jnp.transpose(o, (0, 3, 1, 2)) for o in bu_outputs)  # -> NCHW


# ----------------------------------------------------------------------------
# Deterministic parameter init (synthetic; shapes from BiFPN.__init__)
# ----------------------------------------------------------------------------
def init_params(key, in_channels, out_channels):
    L = len(in_channels)
    keys = iter(jax.random.split(key, 8 * L + 8))
    p = {'lat_w': [], 'lat_b': [], 'fpn_w': [], 'fpn_b': [],
         'd_w': [], 'd_b': [], 'buc_w': [], 'buc_b': [],
         'td_fuse': [], 'bu_fuse': []}
    for i in range(L):
        p['lat_w'].append(0.1 * jax.random.normal(
            next(keys), (1, 1, in_channels[i], out_channels), jnp.float32))
        p['lat_b'].append(0.05 * jax.random.normal(
            next(keys), (out_channels,), jnp.float32))
        p['fpn_w'].append(0.1 * jax.random.normal(
            next(keys), (3, 3, out_channels, out_channels), jnp.float32))
        p['fpn_b'].append(0.05 * jax.random.normal(
            next(keys), (out_channels,), jnp.float32))
    for i in range(L - 1):
        p['d_w'].append(0.1 * jax.random.normal(
            next(keys), (3, 3, out_channels, out_channels), jnp.float32))
        p['d_b'].append(0.05 * jax.random.normal(
            next(keys), (out_channels,), jnp.float32))
        p['buc_w'].append(0.1 * jax.random.normal(
            next(keys), (3, 3, out_channels, out_channels), jnp.float32))
        p['buc_b'].append(0.05 * jax.random.normal(
            next(keys), (out_channels,), jnp.float32))
        p['td_fuse'].append(jnp.ones((2,), jnp.float32)
                            + 0.1 * jax.random.uniform(next(keys), (2,)))
        p['bu_fuse'].append(jnp.ones((3,), jnp.float32)
                            + 0.1 * jax.random.uniform(next(keys), (3,)))
    return p


if __name__ == "__main__":
    key = jax.random.PRNGKey(0)
    in_channels = [8, 16, 32]
    out_channels = 16
    num_outs = 4          # L levels -> L + 1 outputs (extra max-pool level)
    N = 2
    spatials = [16, 8, 4]

    k_in, k_par = jax.random.split(key)
    ks = jax.random.split(k_in, len(in_channels))
    inputs = tuple(
        jax.random.normal(ks[i], (N, in_channels[i], spatials[i], spatials[i]),
                          jnp.float32)
        for i in range(len(in_channels)))

    params = init_params(k_par, in_channels, out_channels)

    outs = jax.block_until_ready(bifpn_forward(inputs, params, use_pallas=True))
    refs = jax.block_until_ready(bifpn_forward(inputs, params, use_pallas=False))

    assert len(outs) == num_outs
    for o, r in zip(outs, refs):
        assert o.shape == r.shape, (o.shape, r.shape)
        err = float(jnp.max(jnp.abs(o - r)))
        assert jnp.allclose(o, r, atol=5e-3, rtol=5e-3), err

    print("KERNEL_OK")
</pallas_src>

<mosaic_0001>
module attributes {stable_mosaic.version = 11 : i64} {
  func.func @_matmul_bias_kernel(%arg0: i32, %arg1: memref<256x8xbf16, #tpu.memory_space<vmem>>, %arg2: memref<8x16xbf16, #tpu.memory_space<vmem>>, %arg3: memref<1x16xf32, #tpu.memory_space<vmem>>, %arg4: memref<256x16xf32, #tpu.memory_space<vmem>>) attributes {dimension_semantics = [#tpu.dimension_semantics<parallel>], iteration_bounds = array<i64: 2>, scalar_prefetch = 0 : i64, scratch_operands = 0 : i64, tpu.core_type = #tpu.core_type<tc>, window_params = [{transform_indices = @transform_0, window_bounds = array<i64: 256, 8>}, {pipeline_mode = #tpu.pipeline_mode<synchronous>, transform_indices = @transform_1, window_bounds = array<i64: 8, 16>}, {pipeline_mode = #tpu.pipeline_mode<synchronous>, transform_indices = @transform_2, window_bounds = array<i64: 1, 16>}, {transform_indices = @transform_3, window_bounds = array<i64: 256, 16>}]} {
    %c0 = arith.constant 0 : index
    %c0_0 = arith.constant 0 : index
    %0 = vector.load %arg1[%c0, %c0_0] : memref<256x8xbf16, #tpu.memory_space<vmem>>, vector<256x8xbf16>
    %c0_1 = arith.constant 0 : index
    %c0_2 = arith.constant 0 : index
    %1 = vector.load %arg2[%c0_1, %c0_2] : memref<8x16xbf16, #tpu.memory_space<vmem>>, vector<8x16xbf16>
    %cst = arith.constant dense<0.000000e+00> : vector<256x16xf32>
    %2 = tpu.matmul %0, %1, %cst {dimension_numbers = #tpu.dot_dimension_numbers<[1], [0], [0], [1], [0, 0, 1, 1], [], []>} : vector<256x8xbf16>, vector<8x16xbf16>, vector<256x16xf32> -> vector<256x16xf32>
    %c0_3 = arith.constant 0 : index
    %c0_4 = arith.constant 0 : index
    %3 = vector.load %arg3[%c0_3, %c0_4] : memref<1x16xf32, #tpu.memory_space<vmem>>, vector<1x16xf32>
    %4 = vector.broadcast %3 : vector<1x16xf32> to vector<256x16xf32>
    %5 = arith.addf %2, %4 : vector<256x16xf32>
    %c0_5 = arith.constant 0 : index
    %c0_6 = arith.constant 0 : index
    %6 = vector.load %arg4[%c0_5, %c0_6] : memref<256x16xf32, #tpu.memory_space<vmem>>, vector<256x16xf32>
    tpu.vector_store %arg4[%c0_5, %c0_6], %5 {strides = array<i32>} : memref<256x16xf32, #tpu.memory_space<vmem>>, vector<256x16xf32>,
    return
  }
  func.func @transform_0(%arg0: i32) -> (i32, i32) {
    %c0_i32 = arith.constant 0 : i32
    %c0_i32_0 = arith.constant 0 : i32
    return %arg0, %c0_i32 : i32, i32
  }
  func.func @transform_1(%arg0: i32) -> (i32, i32) {
    %c0_i32 = arith.constant 0 : i32
    %c0_i32_0 = arith.constant 0 : i32
    %c0_i32_1 = arith.constant 0 : i32
    return %c0_i32, %c0_i32_0 : i32, i32
  }
  func.func @transform_2(%arg0: i32) -> (i32, i32) {
    %c0_i32 = arith.constant 0 : i32
    %c0_i32_0 = arith.constant 0 : i32
    %c0_i32_1 = arith.constant 0 : i32
    return %c0_i32, %c0_i32_0 : i32, i32
  }
  func.func @transform_3(%arg0: i32) -> (i32, i32) {
    %c0_i32 = arith.constant 0 : i32
    %c0_i32_0 = arith.constant 0 : i32
    return %arg0, %c0_i32 : i32, i32
  }
}

</mosaic_0001>

<llo_original>
// kernel: tpu_custom_call.1
$region0: #{tpu_custom_call.1}
  #allocation0 [shape = 'u32[]', space=smem, size = 0x4, offset = 0x4, fixed_abs, tag = 'smem constant byte address 0x4 - core index']
  #allocation1 [shape = 'u32[144,128]{1,0:T(1,128)}', space=vmem, size = 0x12000, scoped, tag = 'internal scratch']
  %s0 = inlined_call_operand.vmem [shape: bf16[512,8], index: 0, kind: input, shape index: {}]
  %s1 = inlined_call_operand.vmem [shape: bf16[8,16], index: 1, kind: input, shape index: {}]
  %s2 = inlined_call_operand.vmem [shape: f32[1,16], index: 2, kind: input, shape index: {}]
  %s3 = inlined_call_operand.vmem [shape: f32[512,16], index: 3, kind: output, shape index: {}]
  %s4 = sld [smem:[#allocation0]]
  $region45: #{tpu_custom_call.1} parent=0
    _
  %s6 = ssub.s32 1, %s4
  %s7 = scalar_select 0, %s6, %s4
  loop: start=0, step=1, limit=4
  $region2: #{tpu_custom_call.1} parent=0 // loop_pre_header
    _
  $region3: #{tpu_custom_call.1} parent=0 // loop_header
    %s9 = sphi 0, %s13
    %p10 = scmp.ge.s32.totalorder %s9, 4
    %s19 = sphi 0, %s21
    %s22 = sphi 0, %s19
    %s23 = sphi 0, %s22
    %s39 = sphi 0, %s23
    %s43 = sphi 0, %s43
    %s45 = sphi 0, %s43
    %s46 = sphi 0, %s45
    %s60 = sphi 0, %s46
    %s64 = sphi 0, %s64
    %s66 = sphi 0, %s64
    %s67 = sphi 0, %s66
    %s81 = sphi 0, %s67
    %s87 = sphi 0, %s89
    %s90 = sphi 0, %s87
    %s91 = sphi 0, %s90
    %s107 = sphi 0, %s91
  $region4: #{tpu_custom_call.1} parent=0 // loop_header_branch
    %12 = sbr.rel (%p10) target = $region8
  $region5: #{tpu_custom_call.1} parent=0 // loop_body
    %s14 = ssub.s32 %s9, 1
    %s15 = ssub.s32 %s9, 2
    %s16 = sadd.s32 %s9, 1
    %s17 = ssub.s32 %s9, %s16
    %p18 = scmp.eq.s32.totalorder %s17, 0
    %s20 = sadd.s32 %s19, 1
    %s21 = scalar_select %p18, %s19, %s20
    %p24 = pneg %p18
    %p25 = scmp.eq.s32.totalorder %s9, 1
    %p26 = por %p24, %p25
    %p27 = scmp.ne.s32.totalorder %s19, %s22
    %p28 = scmp.eq.s32.totalorder %s9, 0
    %p29 = por %p27, %p28
    %p30 = scmp.ne.s32.totalorder %s19, %s22
    %p31 = scmp.eq.s32.totalorder %s14, 1
    %p32 = por %p30, %p31
    %p33 = scmp.ne.s32.totalorder %s22, %s23
    %p34 = scmp.eq.s32.totalorder %s14, 0
    %p35 = por %p33, %p34
    %p36 = scmp.ne.s32.totalorder %s22, %s23
    %p37 = scmp.eq.s32.totalorder %s15, 1
    %p38 = por %p36, %p37
    %p40 = scmp.ne.s32.totalorder %s23, %s39
    %p41 = scmp.eq.s32.totalorder %s15, 0
    %p42 = por %p40, %p41
    %s44 = sadd.s32 %s43, 1
    %p47 = scmp.eq.s32.totalorder %s9, 1
    %p48 = scmp.ne.s32.totalorder %s43, %s45
    %p49 = scmp.eq.s32.totalorder %s9, 0
    %p50 = por %p48, %p49
    %p51 = scmp.ne.s32.totalorder %s43, %s45
    %p52 = scmp.eq.s32.totalorder %s14, 1
    %p53 = por %p51, %p52
    %p54 = scmp.ne.s32.totalorder %s45, %s46
    %p55 = scmp.eq.s32.totalorder %s14, 0
    %p56 = por %p54, %p55
    %p57 = scmp.ne.s32.totalorder %s45, %s46
    %p58 = scmp.eq.s32.totalorder %s15, 1
    %p59 = por %p57, %p58
    %p61 = scmp.ne.s32.totalorder %s46, %s60
    %p62 = scmp.eq.s32.totalorder %s15, 0
    %p63 = por %p61, %p62
    %s65 = sadd.s32 %s64, 1
    %p68 = scmp.eq.s32.totalorder %s9, 1
    %p69 = scmp.ne.s32.totalorder %s64, %s66
    %p70 = scmp.eq.s32.totalorder %s9, 0
    %p71 = por %p69, %p70
    %p72 = scmp.ne.s32.totalorder %s64, %s66
    %p73 = scmp.eq.s32.totalorder %s14, 1
    %p74 = por %p72, %p73
    %p75 = scmp.ne.s32.totalorder %s66, %s67
    %p76 = scmp.eq.s32.totalorder %s14, 0
    %p77 = por %p75, %p76
    %p78 = scmp.ne.s32.totalorder %s66, %s67
    %p79 = scmp.eq.s32.totalorder %s15, 1
    %p80 = por %p78, %p79
    %p82 = scmp.ne.s32.totalorder %s67, %s81
    %p83 = scmp.eq.s32.totalorder %s15, 0
    %p84 = por %p82, %p83
    %s85 = ssub.s32 %s9, %s16
    %p86 = scmp.eq.s32.totalorder %s85, 0
    %s88 = sadd.s32 %s87, 1
    %s89 = scalar_select %p86, %s87, %s88
    %p92 = pneg %p86
    %p93 = scmp.eq.s32.totalorder %s9, 1
    %p94 = por %p92, %p93
    %p95 = scmp.ne.s32.totalorder %s87, %s90
    %p96 = scmp.eq.s32.totalorder %s9, 0
    %p97 = por %p95, %p96
    %p98 = scmp.ne.s32.totalorder %s87, %s90
    %p99 = scmp.eq.s32.totalorder %s14, 1
    %p100 = por %p98, %p99
    %p101 = scmp.ne.s32.totalorder %s90, %s91
    %p102 = scmp.eq.s32.totalorder %s14, 0
    %p103 = por %p101, %p102
    %p104 = scmp.ne.s32.totalorder %s90, %s91
    %p105 = scmp.eq.s32.totalorder %s15, 1
    %p106 = por %p104, %p105
    %p108 = scmp.ne.s32.totalorder %s91, %s107
    %p109 = scmp.eq.s32.totalorder %s15, 0
    %p110 = por %p108, %p109
    %p111 = scmp.le.s32.totalorder 1, %s9
    %p112 = scmp.lt.s32.totalorder %s9, 3
    %p113 = pnand %p111, %p112
    %p114 = pneg %p113
    // Predicated region
    $region9: #{tpu_custom_call.1} parent=5 // pred_check
      _
    $region10: #{tpu_custom_call.1} parent=5 // pred_check_branch
      %116 = sbr.rel (%p113) target = $region12
    $region11: #{tpu_custom_call.1} parent=5 // pred_region
      %s117 = ssub.s32 %s9, 1
      // Predicated region
      $region13: #{tpu_custom_call.1} parent=11 // pred_check
        %p118 = pneg %p56
      $region14: #{tpu_custom_call.1} parent=11 // pred_check_branch
        %120 = sbr.rel (%p118) target = $region16
      $region15: #{tpu_custom_call.1} parent=11 // pred_region
        _
      $region16: #{tpu_custom_call.1} parent=11 // pred_fallthru
        _
      // Predicated region
      $region17: #{tpu_custom_call.1} parent=11 // pred_check
        %p121 = pneg %p77
      $region18: #{tpu_custom_call.1} parent=11 // pred_check_branch
        %123 = sbr.rel (%p121) target = $region20
      $region19: #{tpu_custom_call.1} parent=11 // pred_region
        _
      $region20: #{tpu_custom_call.1} parent=11 // pred_fallthru
        _
    $region12: #{tpu_custom_call.1} parent=5 // pred_fallthru
      _
    %p124 = scmp.lt.s32.totalorder %s9, 2
    // Predicated region
    $region21: #{tpu_custom_call.1} parent=5 // pred_check
      %p125 = pneg %p124
    $region22: #{tpu_custom_call.1} parent=5 // pred_check_branch
      %127 = sbr.rel (%p125) target = $region24
    $region23: #{tpu_custom_call.1} parent=5 // pred_region
      // Predicated region
      $region25: #{tpu_custom_call.1} parent=23 // pred_check
        %p128 = pneg %p29
      $region26: #{tpu_custom_call.1} parent=23 // pred_check_branch
        %130 = sbr.rel (%p128) target = $region28
      $region27: #{tpu_custom_call.1} parent=23 // pred_region
        %s131 = smul.u32 32, %s9
        %p132 = scmp.lt.s32.totalorder %s131, 63
        %s133 = scalar_select %p132, %s131, 63
        %s134 = smul.addr %s133, 4
        %s135 = scalar_lea.vmem %s0, %s134
        %s136 = smul.u32 32, %s9
      $region28: #{tpu_custom_call.1} parent=23 // pred_fallthru
        _
    $region24: #{tpu_custom_call.1} parent=5 // pred_fallthru
      _
    %p137 = scmp.le.s32.totalorder 1, %s9
    %p138 = scmp.lt.s32.totalorder %s9, 3
    %p139 = pnand %p137, %p138
    %p140 = pneg %p139
    // Predicated region
    $region29: #{tpu_custom_call.1} parent=5 // pred_check
      _
    $region30: #{tpu_custom_call.1} parent=5 // pred_check_branch
      %142 = sbr.rel (%p139) target = $region32
    $region31: #{tpu_custom_call.1} parent=5 // pred_region
      %s143 = ssub.s32 %s9, 1
      %s144 = smul.u32 32, %s14
      %p145 = scmp.lt.s32.totalorder %s144, 63
      %s146 = scalar_select %p145, %s144, 63
      %s147 = smul.addr %s146, 4
      %s148 = scalar_lea.vmem %s0, %s147
      %p149 = pneg %p35
      %p150 = pneg %p32
      %p151 = pneg %p56
      %p152 = pneg %p53
      %p153 = pneg %p77
      %p154 = pneg %p74
      %p155 = pneg %p103
      %p156 = pneg %p100
      %s157 = smul.u32 32, %s14
      %p158 = scmp.lt.s32.totalorder %s157, 63
      %s159 = scalar_select %p158, %s157, 63
      %s160 = smul.addr %s159, 8
      %s161 = scalar_lea.vmem %s3, %s160
      %s162 = smul.u32 32, %s14
      %p163 = scmp.lt.s32.totalorder %s162, 63
      %s164 = scalar_select %p163, %s162, 63
      %s165 = smul.addr %s164, 4
      %s166 = scalar_lea.vmem %s0, %s165
      %s167 = smul.u32 32, %s14
      %s168 = smul.u32 32, %s14
      %p169 = scmp.lt.s32.totalorder %s168, 63
      %s170 = scalar_select %p169, %s168, 63
      %s171 = smul.addr %s170, 8
      %s172 = scalar_lea.vmem %s3, %s171
      %s173 = smul.u32 32, %s14
      %v175 = vld [vmem:[%s166] sm:$0xf]
      %v176 = vld [vmem:[%s166 + $0x4] sm:$0xf]
      %v177 = vld [vmem:[%s166 + $0x8] sm:$0xf]
      %v178 = vld [vmem:[%s166 + $0xc] sm:$0xf]
      %v179 = vld [vmem:[%s166 + $0x10] sm:$0xf]
      %v180 = vld [vmem:[%s166 + $0x14] sm:$0xf]
      %v181 = vld [vmem:[%s166 + $0x18] sm:$0xf]
      %v182 = vld [vmem:[%s166 + $0x1c] sm:$0xf]
      %v183 = vld [vmem:[%s166 + $0x20] sm:$0xf]
      %v184 = vld [vmem:[%s166 + $0x24] sm:$0xf]
      %v185 = vld [vmem:[%s166 + $0x28] sm:$0xf]
      %v186 = vld [vmem:[%s166 + $0x2c] sm:$0xf]
      %v187 = vld [vmem:[%s166 + $0x30] sm:$0xf]
      %v188 = vld [vmem:[%s166 + $0x34] sm:$0xf]
      %v189 = vld [vmem:[%s166 + $0x38] sm:$0xf]
      %v190 = vld [vmem:[%s166 + $0x3c] sm:$0xf]
      %v191 = vld [vmem:[%s166 + $0x40] sm:$0xf]
      %v192 = vld [vmem:[%s166 + $0x44] sm:$0xf]
      %v193 = vld [vmem:[%s166 + $0x48] sm:$0xf]
      %v194 = vld [vmem:[%s166 + $0x4c] sm:$0xf]
      %v195 = vld [vmem:[%s166 + $0x50] sm:$0xf]
      %v196 = vld [vmem:[%s166 + $0x54] sm:$0xf]
      %v197 = vld [vmem:[%s166 + $0x58] sm:$0xf]
      %v198 = vld [vmem:[%s166 + $0x5c] sm:$0xf]
      %v199 = vld [vmem:[%s166 + $0x60] sm:$0xf]
      %v200 = vld [vmem:[%s166 + $0x64] sm:$0xf]
      %v201 = vld [vmem:[%s166 + $0x68] sm:$0xf]
      %v202 = vld [vmem:[%s166 + $0x6c] sm:$0xf]
      %v203 = vld [vmem:[%s166 + $0x70] sm:$0xf]
      %v204 = vld [vmem:[%s166 + $0x74] sm:$0xf]
      %v205 = vld [vmem:[%s166 + $0x78] sm:$0xf]
      %v206 = vld [vmem:[%s166 + $0x7c] sm:$0xf]
      %v207 = vld [vmem:[%s1] sm:$0xf]
      %v208 = vld [vmem:[%s2] sm:$0x1]
      %v210 = vlaneseq
      %v211 = vshrl.u32 %v210, 7
      %v212 = vsub.s32 0, %v211
      %v213 = vrot.slane %v208, %v212
      %v247 = vunpack.c.l.b16 %v175
      %v248 = vunpack.c.l.b16 %v176
      %v249 = vunpack.c.l.b16 %v177
      %v250 = vunpack.c.l.b16 %v178
      %v251 = vunpack.c.l.b16 %v179
      %v252 = vunpack.c.l.b16 %v180
      %v253 = vunpack.c.l.b16 %v181
      %v254 = vunpack.c.l.b16 %v182
      %v255 = vunpack.c.l.b16 %v183
      %v256 = vunpack.c.l.b16 %v184
      %v257 = vunpack.c.l.b16 %v185
      %v258 = vunpack.c.l.b16 %v186
      %v259 = vunpack.c.l.b16 %v187
      %v260 = vunpack.c.l.b16 %v188
      %v261 = vunpack.c.l.b16 %v189
      %v262 = vunpack.c.l.b16 %v190
      %v263 = vunpack.c.l.b16 %v191
      %v264 = vunpack.c.l.b16 %v192
      %v265 = vunpack.c.l.b16 %v193
      %v266 = vunpack.c.l.b16 %v194
      %v267 = vunpack.c.l.b16 %v195
      %v268 = vunpack.c.l.b16 %v196
      %v269 = vunpack.c.l.b16 %v197
      %v270 = vunpack.c.l.b16 %v198
      %v271 = vunpack.c.l.b16 %v199
      %v272 = vunpack.c.l.b16 %v200
      %v273 = vunpack.c.l.b16 %v201
      %v274 = vunpack.c.l.b16 %v202
      %v275 = vunpack.c.l.b16 %v203
      %v276 = vunpack.c.l.b16 %v204
      %v277 = vunpack.c.l.b16 %v205
      %v278 = vunpack.c.l.b16 %v206
      %v279 = vpack.c.b16 %v248, %v247
      %v280 = vpack.c.b16 %v250, %v249
      %v281 = vpack.c.b16 %v252, %v251
      %v282 = vpack.c.b16 %v254, %v253
      %v283 = vpack.c.b16 %v256, %v255
      %v284 = vpack.c.b16 %v258, %v257
      %v285 = vpack.c.b16 %v260, %v259
      %v286 = vpack.c.b16 %v262, %v261
      %v287 = vpack.c.b16 %v264, %v263
      %v288 = vpack.c.b16 %v266, %v265
      %v289 = vpack.c.b16 %v268, %v267
      %v290 = vpack.c.b16 %v270, %v269
      %v291 = vpack.c.b16 %v272, %v271
      %v292 = vpack.c.b16 %v274, %v273
      %v293 = vpack.c.b16 %v276, %v275
      %v294 = vpack.c.b16 %v278, %v277
      %vm295 = vcmask 64512
      %v297 = vsel %vm295, %v279, 0
      %v300 = vsel %vm295, %v280, 0
      %v303 = vsel %vm295, %v281, 0
      %v306 = vsel %vm295, %v282, 0
      %v309 = vsel %vm295, %v283, 0
      %v312 = vsel %vm295, %v284, 0
      %v315 = vsel %vm295, %v285, 0
      %v318 = vsel %vm295, %v286, 0
      %v321 = vsel %vm295, %v287, 0
      %v324 = vsel %vm295, %v288, 0
      %v327 = vsel %vm295, %v289, 0
      %v330 = vsel %vm295, %v290, 0
      %v333 = vsel %vm295, %v291, 0
      %v336 = vsel %vm295, %v292, 0
      %v339 = vsel %vm295, %v293, 0
      %v342 = vsel %vm295, %v294, 0
      %vm344 = vcmask 1043456
      %v346 = vsel %vm344, %v207, 0
      %348 = vmatprep.subr.bf16.mxu0 0
      %349 = vmatpush1.bf16.msra.mxu0 0
      %350 = vmatprep.subr.bf16.mxu0 0
      %351 = vmatpush1.bf16.msra.mxu0 0
      %352 = vmatprep.subr.bf16.mxu0 0
      %353 = vmatpush1.bf16.msra.mxu0 0
      %354 = vmatprep.subr.bf16.mxu0 0
      %355 = vmatpush1.bf16.msra.mxu0 0
      %356 = vmatprep.subr.bf16.mxu0 0
      %357 = vmatpush1.bf16.msra.mxu0 0
      %358 = vmatprep.subr.bf16.mxu0 0
      %359 = vmatpush1.bf16.msra.mxu0 0
      %360 = vmatprep.subr.bf16.mxu0 0
      %361 = vmatpush1.bf16.msra.mxu0 0
      %362 = vmatprep.subr.bf16.mxu0 0
      %363 = vmatpush1.bf16.msra.mxu0 %v346
      %364 = vmatprep.subr.bf16.mxu0 0
      %365 = vmatpush2.bf16.msra.mxu0 0
      %366 = vmatprep.subr.bf16.mxu0 0
      %367 = vmatpush2.bf16.msra.mxu0 0
      %368 = vmatprep.subr.bf16.mxu0 0
      %369 = vmatpush2.bf16.msra.mxu0 0
      %370 = vmatprep.subr.bf16.mxu0 0
      %371 = vmatpush2.bf16.msra.mxu0 0
      %372 = vmatprep.subr.bf16.mxu0 0
      %373 = vmatpush2.bf16.msra.mxu0 0
      %374 = vmatprep.subr.bf16.mxu0 0
      %375 = vmatpush2.bf16.msra.mxu0 0
      %376 = vmatprep.subr.bf16.mxu0 0
      %377 = vmatpush2.bf16.msra.mxu0 0
      %378 = vmatprep.subr.bf16.mxu0 0
      %379 = vmatpush2.bf16.msra.mxu0 0
      %380 = vmatprep.mubr.bf16.mxu0 0
      %381 = vmatmul.mubr.bf16.gmra.mxu0 %v297
      %v382 = vpop.f32.mrf.mxu0
      %v383 = vadd.f32 %v213, %v382
      %v384 = vpop.f32.mrf.mxu0
      %v385 = vpop.f32.mrf.mxu0
      %v386 = vadd.f32 %v213, %v385
      %v387 = vpop.f32.mrf.mxu0
      %388 = vmatprep.mubr.bf16.mxu0 0
      %389 = vmatmul.mubr.bf16.gmra.mxu0 %v300
      %v390 = vpop.f32.mrf.mxu0
      %v391 = vadd.f32 %v213, %v390
      %v392 = vpop.f32.mrf.mxu0
      %v393 = vpop.f32.mrf.mxu0
      %v394 = vadd.f32 %v213, %v393
      %v395 = vpop.f32.mrf.mxu0
      %396 = vmatprep.mubr.bf16.mxu0 0
      %397 = vmatmul.mubr.bf16.gmra.mxu0 %v303
      %v398 = vpop.f32.mrf.mxu0
      %v399 = vadd.f32 %v213, %v398
      %v400 = vpop.f32.mrf.mxu0
      %v401 = vpop.f32.mrf.mxu0
      %v402 = vadd.f32 %v213, %v401
      %v403 = vpop.f32.mrf.mxu0
      %404 = vmatprep.mubr.bf16.mxu0 0
      %405 = vmatmul.mubr.bf16.gmra.mxu0 %v306
      %v406 = vpop.f32.mrf.mxu0
      %v407 = vadd.f32 %v213, %v406
      %v408 = vpop.f32.mrf.mxu0
      %v409 = vpop.f32.mrf.mxu0
      %v410 = vadd.f32 %v213, %v409
      %v411 = vpop.f32.mrf.mxu0
      %412 = vmatprep.mubr.bf16.mxu0 0
      %413 = vmatmul.mubr.bf16.gmra.mxu0 %v309
      %v414 = vpop.f32.mrf.mxu0
      %v415 = vadd.f32 %v213, %v414
      %v416 = vpop.f32.mrf.mxu0
      %v417 = vpop.f32.mrf.mxu0
      %v418 = vadd.f32 %v213, %v417
      %v419 = vpop.f32.mrf.mxu0
      %420 = vmatprep.mubr.bf16.mxu0 0
      %421 = vmatmul.mubr.bf16.gmra.mxu0 %v312
      %v422 = vpop.f32.mrf.mxu0
      %v423 = vadd.f32 %v213, %v422
      %v424 = vpop.f32.mrf.mxu0
      %v425 = vpop.f32.mrf.mxu0
      %v426 = vadd.f32 %v213, %v425
      %v427 = vpop.f32.mrf.mxu0
      %428 = vmatprep.mubr.bf16.mxu0 0
      %429 = vmatmul.mubr.bf16.gmra.mxu0 %v315
      %v430 = vpop.f32.mrf.mxu0
      %v431 = vadd.f32 %v213, %v430
      %v432 = vpop.f32.mrf.mxu0
      %v433 = vpop.f32.mrf.mxu0
      %v434 = vadd.f32 %v213, %v433
      %v435 = vpop.f32.mrf.mxu0
      %436 = vmatprep.mubr.bf16.mxu0 0
      %437 = vmatmul.mubr.bf16.gmra.mxu0 %v318
      %v438 = vpop.f32.mrf.mxu0
      %v439 = vadd.f32 %v213, %v438
      %v440 = vpop.f32.mrf.mxu0
      %v441 = vpop.f32.mrf.mxu0
      %v442 = vadd.f32 %v213, %v441
      %v443 = vpop.f32.mrf.mxu0
      %444 = vmatprep.mubr.bf16.mxu0 0
      %445 = vmatmul.mubr.bf16.gmra.mxu0 %v321
      %v446 = vpop.f32.mrf.mxu0
      %v447 = vadd.f32 %v213, %v446
      %v448 = vpop.f32.mrf.mxu0
      %v449 = vpop.f32.mrf.mxu0
      %v450 = vadd.f32 %v213, %v449
      %v451 = vpop.f32.mrf.mxu0
      %452 = vmatprep.mubr.bf16.mxu0 0
      %453 = vmatmul.mubr.bf16.gmra.mxu0 %v324
      %v454 = vpop.f32.mrf.mxu0
      %v455 = vadd.f32 %v213, %v454
      %v456 = vpop.f32.mrf.mxu0
      %v457 = vpop.f32.mrf.mxu0
      %v458 = vadd.f32 %v213, %v457
      %v459 = vpop.f32.mrf.mxu0
      %460 = vmatprep.mubr.bf16.mxu0 0
      %461 = vmatmul.mubr.bf16.gmra.mxu0 %v327
      %v462 = vpop.f32.mrf.mxu0
      %v463 = vadd.f32 %v213, %v462
      %v464 = vpop.f32.mrf.mxu0
      %v465 = vpop.f32.mrf.mxu0
      %v466 = vadd.f32 %v213, %v465
      %v467 = vpop.f32.mrf.mxu0
      %468 = vmatprep.mubr.bf16.mxu0 0
      %469 = vmatmul.mubr.bf16.gmra.mxu0 %v330
      %v470 = vpop.f32.mrf.mxu0
      %v471 = vadd.f32 %v213, %v470
      %v472 = vpop.f32.mrf.mxu0
      %v473 = vpop.f32.mrf.mxu0
      %v474 = vadd.f32 %v213, %v473
      %v475 = vpop.f32.mrf.mxu0
      %476 = vmatprep.mubr.bf16.mxu0 0
      %477 = vmatmul.mubr.bf16.gmra.mxu0 %v333
      %v478 = vpop.f32.mrf.mxu0
      %v479 = vadd.f32 %v213, %v478
      %v480 = vpop.f32.mrf.mxu0
      %v481 = vpop.f32.mrf.mxu0
      %v482 = vadd.f32 %v213, %v481
      %v483 = vpop.f32.mrf.mxu0
      %484 = vmatprep.mubr.bf16.mxu0 0
      %485 = vmatmul.mubr.bf16.gmra.mxu0 %v336
      %v486 = vpop.f32.mrf.mxu0
      %v487 = vadd.f32 %v213, %v486
      %v488 = vpop.f32.mrf.mxu0
      %v489 = vpop.f32.mrf.mxu0
      %v490 = vadd.f32 %v213, %v489
      %v491 = vpop.f32.mrf.mxu0
      %492 = vmatprep.mubr.bf16.mxu0 0
      %493 = vmatmul.mubr.bf16.gmra.mxu0 %v339
      %v494 = vpop.f32.mrf.mxu0
      %v495 = vadd.f32 %v213, %v494
      %v496 = vpop.f32.mrf.mxu0
      %v497 = vpop.f32.mrf.mxu0
      %v498 = vadd.f32 %v213, %v497
      %v499 = vpop.f32.mrf.mxu0
      %500 = vmatprep.mubr.bf16.mxu0 0
      %501 = vmatmul.mubr.bf16.gmra.mxu0 %v342
      %v502 = vpop.f32.mrf.mxu0
      %v503 = vadd.f32 %v213, %v502
      %v504 = vpop.f32.mrf.mxu0
      %v505 = vpop.f32.mrf.mxu0
      %v506 = vadd.f32 %v213, %v505
      %v507 = vpop.f32.mrf.mxu0
      %508 = vdwg.mxu0
      %vm509 = vcmask 130048
      %510 = vst.msk [vmem:[%s172] sm:$0xff] %vm509, %v383
      %511 = vst.msk [vmem:[%s172 + $0x8] sm:$0xff] %vm509, %v386
      %512 = vst.msk [vmem:[%s172 + $0x10] sm:$0xff] %vm509, %v391
      %513 = vst.msk [vmem:[%s172 + $0x18] sm:$0xff] %vm509, %v394
      %514 = vst.msk [vmem:[%s172 + $0x20] sm:$0xff] %vm509, %v399
      %515 = vst.msk [vmem:[%s172 + $0x28] sm:$0xff] %vm509, %v402
      %516 = vst.msk [vmem:[%s172 + $0x30] sm:$0xff] %vm509, %v407
      %517 = vst.msk [vmem:[%s172 + $0x38] sm:$0xff] %vm509, %v410
      %518 = vst.msk [vmem:[%s172 + $0x40] sm:$0xff] %vm509, %v415
      %519 = vst.msk [vmem:[%s172 + $0x48] sm:$0xff] %vm509, %v418
      %520 = vst.msk [vmem:[%s172 + $0x50] sm:$0xff] %vm509, %v423
      %521 = vst.msk [vmem:[%s172 + $0x58] sm:$0xff] %vm509, %v426
      %522 = vst.msk [vmem:[%s172 + $0x60] sm:$0xff] %vm509, %v431
      %523 = vst.msk [vmem:[%s172 + $0x68] sm:$0xff] %vm509, %v434
      %524 = vst.msk [vmem:[%s172 + $0x70] sm:$0xff] %vm509, %v439
      %525 = vst.msk [vmem:[%s172 + $0x78] sm:$0xff] %vm509, %v442
      %526 = vst.msk [vmem:[%s172 + $0x80] sm:$0xff] %vm509, %v447
      %527 = vst.msk [vmem:[%s172 + $0x88] sm:$0xff] %vm509, %v450
      %528 = vst.msk [vmem:[%s172 + $0x90] sm:$0xff] %vm509, %v455
      %529 = vst.msk [vmem:[%s172 + $0x98] sm:$0xff] %vm509, %v458
      %530 = vst.msk [vmem:[%s172 + $0xa0] sm:$0xff] %vm509, %v463
      %531 = vst.msk [vmem:[%s172 + $0xa8] sm:$0xff] %vm509, %v466
      %532 = vst.msk [vmem:[%s172 + $0xb0] sm:$0xff] %vm509, %v471
      %533 = vst.msk [vmem:[%s172 + $0xb8] sm:$0xff] %vm509, %v474
      %534 = vst.msk [vmem:[%s172 + $0xc0] sm:$0xff] %vm509, %v479
      %535 = vst.msk [vmem:[%s172 + $0xc8] sm:$0xff] %vm509, %v482
      %536 = vst.msk [vmem:[%s172 + $0xd0] sm:$0xff] %vm509, %v487
      %537 = vst.msk [vmem:[%s172 + $0xd8] sm:$0xff] %vm509, %v490
      %538 = vst.msk [vmem:[%s172 + $0xe0] sm:$0xff] %vm509, %v495
      %539 = vst.msk [vmem:[%s172 + $0xe8] sm:$0xff] %vm509, %v498
      %540 = vst.msk [vmem:[%s172 + $0xf0] sm:$0xff] %vm509, %v503
      %541 = vst.msk [vmem:[%s172 + $0xf8] sm:$0xff] %vm509, %v506
      %s542 = smul.u32 32, %s14
      %p543 = scmp.lt.s32.totalorder %s542, 63
      %s544 = scalar_select %p543, %s542, 63
      %s545 = smul.addr %s544, 8
      %s546 = scalar_lea.vmem %s3, %s545
      // Predicated region
      $region33: #{tpu_custom_call.1} parent=31 // pred_check
        %p547 = pneg %p100
      $region34: #{tpu_custom_call.1} parent=31 // pred_check_branch
        %549 = sbr.rel (%p547) target = $region36
      $region35: #{tpu_custom_call.1} parent=31 // pred_region
        %s550 = smul.u32 32, %s14
      $region36: #{tpu_custom_call.1} parent=31 // pred_fallthru
        _
    $region32: #{tpu_custom_call.1} parent=5 // pred_fallthru
      _
    %p551 = scmp.le.s32.totalorder 2, %s9
    // Predicated region
    $region37: #{tpu_custom_call.1} parent=5 // pred_check
      %p552 = pneg %p551
    $region38: #{tpu_custom_call.1} parent=5 // pred_check_branch
      %554 = sbr.rel (%p552) target = $region40
    $region39: #{tpu_custom_call.1} parent=5 // pred_region
      %s555 = ssub.s32 %s9, 2
      // Predicated region
      $region41: #{tpu_custom_call.1} parent=39 // pred_check
        %p556 = pneg %p106
      $region42: #{tpu_custom_call.1} parent=39 // pred_check_branch
        %558 = sbr.rel (%p556) target = $region44
      $region43: #{tpu_custom_call.1} parent=39 // pred_region
        %s559 = smul.u32 32, %s15
        %p560 = scmp.lt.s32.totalorder %s559, 63
        %s561 = scalar_select %p560, %s559, 63
        %s562 = smul.addr %s561, 8
        %s563 = scalar_lea.vmem %s3, %s562
      $region44: #{tpu_custom_call.1} parent=39 // pred_fallthru
        _
    $region40: #{tpu_custom_call.1} parent=5 // pred_fallthru
      _
  $region6: #{tpu_custom_call.1} parent=0 // loop_footer
    %s13 = sadd.s32 1, %s9
  $region7: #{tpu_custom_call.1} parent=0 // loop_footer_branch
    %8 = sbr.rel target = $region3
  $region8: #{tpu_custom_call.1} parent=0 // loop_exit
    _

</llo_original>
